<compile_context>
chip_gen: v7x
topology: tpu7x:2x2x1
jax: 0.10.0
libtpu: 0.0.40
codegen_flags: <defaults>
</compile_context>

<pallas_src>
import functools

import jax
import jax.numpy as jnp
from jax.experimental import pallas as pl
from jax.experimental.pallas import tpu as pltpu


def _rmsnorm_kernel(x_ref, g_ref, o_ref, *, eps):
    # x_ref / o_ref: (BN, C, TS) ; g_ref: (C, 1) pre-scaled by sqrt(C).
    x = x_ref[...]                                      # (BN, C, TS) f32
    ss = jnp.sum(x * x, axis=1, keepdims=True)          # (BN, 1, TS) sum of squares over C
    # 1 / max(sqrt(ss), eps)  ==  rsqrt(max(ss, eps^2))  (sqrt is monotone; eps^2=1e-24 is
    # a normal f32) — one rsqrt per spatial column instead of sqrt + C divides.
    inv = jax.lax.rsqrt(jnp.maximum(ss, eps * eps))     # (BN, 1, TS)
    o_ref[...] = x * inv * g_ref[...]                   # (C,1) gain broadcasts; pure VPU


def rmsnorm(x, g, *, eps=1e-12, block_bytes=4 * 1024 * 1024):
    """RMS-normalize over the channel dim of an NCDHW tensor.

    y = x / max(||x||_2 over C, eps) * g * sqrt(C)

    x: (N, C, D, H, W) float32 ; g: (1, C, 1, 1, 1) float32.
    block_bytes: target per-block VMEM footprint (~2-8 MiB is the sweet spot).
    """
    N, C, D, H, W = x.shape
    S = D * H * W
    scale = float(C) ** 0.5

    x_flat = x.reshape(N, C, S)                              # contiguous -> free reshape
    g_flat = (g.reshape(C, 1) * scale).astype(x.dtype)       # fold sqrt(C) into the gain

    bytes_per_col = 4 * C  # one f32 spatial column across all channels

    # Lane tile: biggest multiple of 128 that fits the block budget, or the full
    # spatial extent if that already fits (full-dim blocks need no 128 alignment).
    max_ts = max(128, (block_bytes // bytes_per_col) // 128 * 128)
    if S <= max_ts:
        TS = S
        # Spatial extent alone is too small: also block over N so each grid step
        # still moves close to `block_bytes` of HBM traffic.
        BN = max(1, min(N, block_bytes // max(1, bytes_per_col * S)))
    else:
        TS = max_ts
        BN = 1

    grid = (pl.cdiv(N, BN), pl.cdiv(S, TS))

    # Explicit scoped-VMEM limit from the actual footprint:
    # 2 double-buffered input blocks + 2 output blocks + slack.
    block_vmem = 4 * BN * C * TS
    vmem_limit = int(max(16 * 1024 * 1024, 4 * block_vmem + 2 * 1024 * 1024))

    out_flat = pl.pallas_call(
        functools.partial(_rmsnorm_kernel, eps=eps),
        out_shape=jax.ShapeDtypeStruct((N, C, S), x.dtype),
        grid_spec=pltpu.PrefetchScalarGridSpec(
            num_scalar_prefetch=0,
            grid=grid,
            in_specs=[
                pl.BlockSpec((BN, C, TS), lambda n, s: (n, 0, s)),
                pl.BlockSpec((C, 1), lambda n, s: (0, 0)),
            ],
            out_specs=pl.BlockSpec((BN, C, TS), lambda n, s: (n, 0, s)),
        ),
        compiler_params=pltpu.CompilerParams(
            dimension_semantics=("parallel", "parallel"),
            vmem_limit_bytes=vmem_limit,
        ),
    )(x_flat, g_flat)

    return out_flat.reshape(N, C, D, H, W)


def rmsnorm_ref(x, g, *, eps=1e-12):
    # Pure-JAX reference matching F.normalize(x, dim=1) * g * sqrt(C)
    C = x.shape[1]
    norm = jnp.sqrt(jnp.sum(x * x, axis=1, keepdims=True))
    return x / jnp.maximum(norm, eps) * g * (float(C) ** 0.5)


if __name__ == "__main__":
    key = jax.random.PRNGKey(0)

    # Test 1: lane-aligned spatial size (S = 256), default block budget.
    N, C, D, H, W = 2, 4, 4, 8, 8
    x = jax.random.normal(key, (N, C, D, H, W), dtype=jnp.float32)
    g = jnp.ones((1, C, 1, 1, 1), dtype=jnp.float32)  # nn.Parameter(torch.ones(1, dim, 1, 1, 1))
    out = jax.block_until_ready(rmsnorm(x, g))
    assert out.shape == (N, C, D, H, W)
    assert jnp.allclose(out, rmsnorm_ref(x, g), atol=1e-5, rtol=1e-5)

    # Test 2: ragged spatial size (S = 105 < 128 -> full-dim lane block), non-trivial gain.
    N2, C2, D2, H2, W2 = 1, 8, 3, 5, 7
    x2 = jax.random.normal(jax.random.PRNGKey(1), (N2, C2, D2, H2, W2), dtype=jnp.float32)
    g2 = 0.5 + jax.random.uniform(jax.random.PRNGKey(2), (1, C2, 1, 1, 1), dtype=jnp.float32)
    out2 = jax.block_until_ready(rmsnorm(x2, g2))
    assert out2.shape == (N2, C2, D2, H2, W2)
    assert jnp.allclose(out2, rmsnorm_ref(x2, g2), atol=1e-5, rtol=1e-5)

    # Test 3: force TS < S with S % TS != 0 (partial tail block on the lane axis)
    # by shrinking the block budget: S = 310, TS = 256 -> tail of 54 valid columns.
    N3, C3, D3, H3, W3 = 3, 8, 2, 5, 31
    x3 = jax.random.normal(jax.random.PRNGKey(3), (N3, C3, D3, H3, W3), dtype=jnp.float32)
    g3 = 0.5 + jax.random.uniform(jax.random.PRNGKey(4), (1, C3, 1, 1, 1), dtype=jnp.float32)
    out3 = jax.block_until_ready(rmsnorm(x3, g3, block_bytes=8 * 1024))
    assert jnp.allclose(out3, rmsnorm_ref(x3, g3), atol=1e-5, rtol=1e-5)

    # Test 4: force BN > 1 with N % BN != 0 (partial block on the batch axis):
    # N = 3, S = 32, BN = 2 -> second N block has 1 valid slice.
    N4, C4, D4, H4, W4 = 3, 4, 2, 4, 4
    x4 = jax.random.normal(jax.random.PRNGKey(5), (N4, C4, D4, H4, W4), dtype=jnp.float32)
    g4 = 0.5 + jax.random.uniform(jax.random.PRNGKey(6), (1, C4, 1, 1, 1), dtype=jnp.float32)
    out4 = jax.block_until_ready(rmsnorm(x4, g4, block_bytes=1024))
    assert jnp.allclose(out4, rmsnorm_ref(x4, g4), atol=1e-5, rtol=1e-5)

    print("KERNEL_OK")
</pallas_src>

<mosaic_0001>
module attributes {stable_mosaic.version = 11 : i64} {
  func.func @_rmsnorm_kernel(%arg0: i32, %arg1: i32, %arg2: memref<2x4x256xf32, #tpu.memory_space<vmem>>, %arg3: memref<4x1xf32, #tpu.memory_space<vmem>>, %arg4: memref<2x4x256xf32, #tpu.memory_space<vmem>>) attributes {dimension_semantics = [#tpu.dimension_semantics<parallel>, #tpu.dimension_semantics<parallel>], iteration_bounds = array<i64: 1, 1>, scalar_prefetch = 0 : i64, scratch_operands = 0 : i64, tpu.core_type = #tpu.core_type<tc>, window_params = [{transform_indices = @transform_0, window_bounds = array<i64: 2, 4, 256>}, {pipeline_mode = #tpu.pipeline_mode<synchronous>, transform_indices = @transform_1, window_bounds = array<i64: 4, 1>}, {transform_indices = @transform_2, window_bounds = array<i64: 2, 4, 256>}]} {
    %c0 = arith.constant 0 : index
    %c0_0 = arith.constant 0 : index
    %c0_1 = arith.constant 0 : index
    %0 = vector.load %arg2[%c0, %c0_0, %c0_1] : memref<2x4x256xf32, #tpu.memory_space<vmem>>, vector<2x4x256xf32>
    %1 = arith.mulf %0, %0 : vector<2x4x256xf32>
    %cst = arith.constant dense<0.000000e+00> : vector<2x256xf32>
    %2 = vector.multi_reduction <add>, %1, %cst [1] : vector<2x4x256xf32> to vector<2x256xf32>
    %3 = vector.shape_cast %2 : vector<2x256xf32> to vector<2x1x256xf32>
    %cst_2 = arith.constant 1.000000e-24 : f32
    %4 = vector.broadcast %cst_2 : f32 to vector<2x1x256xf32>
    %5 = arith.maximumf %3, %4 : vector<2x1x256xf32>
    %6 = math.rsqrt %5 : vector<2x1x256xf32>
    %7 = vector.broadcast %6 : vector<2x1x256xf32> to vector<2x4x256xf32>
    %8 = arith.mulf %0, %7 : vector<2x4x256xf32>
    %c0_3 = arith.constant 0 : index
    %c0_4 = arith.constant 0 : index
    %9 = vector.load %arg3[%c0_3, %c0_4] : memref<4x1xf32, #tpu.memory_space<vmem>>, vector<4x1xf32>
    %10 = vector.shape_cast %9 : vector<4x1xf32> to vector<1x4x1xf32>
    %11 = vector.broadcast %10 : vector<1x4x1xf32> to vector<2x4x256xf32>
    %12 = arith.mulf %8, %11 : vector<2x4x256xf32>
    %c0_5 = arith.constant 0 : index
    %c0_6 = arith.constant 0 : index
    %c0_7 = arith.constant 0 : index
    %13 = vector.load %arg4[%c0_5, %c0_6, %c0_7] : memref<2x4x256xf32, #tpu.memory_space<vmem>>, vector<2x4x256xf32>
    tpu.vector_store %arg4[%c0_5, %c0_6, %c0_7], %12 {strides = array<i32>} : memref<2x4x256xf32, #tpu.memory_space<vmem>>, vector<2x4x256xf32>,
    return
  }
  func.func @transform_0(%arg0: i32, %arg1: i32) -> (i32, i32, i32) {
    %c0_i32 = arith.constant 0 : i32
    %c0_i32_0 = arith.constant 0 : i32
    return %arg0, %c0_i32, %arg1 : i32, i32, i32
  }
  func.func @transform_1(%arg0: i32, %arg1: i32) -> (i32, i32) {
    %c0_i32 = arith.constant 0 : i32
    %c0_i32_0 = arith.constant 0 : i32
    %c0_i32_1 = arith.constant 0 : i32
    return %c0_i32, %c0_i32_0 : i32, i32
  }
  func.func @transform_2(%arg0: i32, %arg1: i32) -> (i32, i32, i32) {
    %c0_i32 = arith.constant 0 : i32
    %c0_i32_0 = arith.constant 0 : i32
    return %arg0, %c0_i32, %arg1 : i32, i32, i32
  }
}

</mosaic_0001>

<llo_original>
// kernel: tpu_custom_call.1
$region0: #{tpu_custom_call.1}
  #allocation0 [shape = 'u32[]', space=smem, size = 0x4, offset = 0x4, fixed_abs, tag = 'smem constant byte address 0x4 - core index']
  #allocation1 [shape = 'u32[144,128]{1,0:T(1,128)}', space=vmem, size = 0x12000, scoped, tag = 'internal scratch']
  %s0 = inlined_call_operand.hbm [shape: f32[2,4,256], index: 0, kind: input, shape index: {}]
  %s1 = inlined_call_operand.vmem [shape: f32[4,1], index: 1, kind: input, shape index: {}]
  %s2 = inlined_call_operand.hbm [shape: f32[2,4,256], index: 2, kind: output, shape index: {}]
  %s3 = sld [smem:[#allocation0]]
  $region22: #{tpu_custom_call.1} parent=0
    _
  %s5 = ssub.s32 1, %s3
  %s6 = scalar_select 0, %s5, %s3
  $region1: #{tpu_custom_call.1} parent=0
    #allocation2 [shape = 'u8[8192]{0}', space=vmem, size = 0x2000, scoped, tag = 'input window, operand 0, single buffered']
    #allocation3 [shape = 's32[1]{0}', space=sflag, size = 0x4, scoped, tag = 'scoped memory for tpu_custom_call.1']
    #allocation4 [shape = 's32[1]{0}', space=sflag, size = 0x4, scoped, tag = 'scoped memory for tpu_custom_call.1']
    #allocation5 [shape = 'u8[8192]{0}', space=vmem, size = 0x2000, scoped, tag = 'output window, operand 0, single buffered']
    %7 = vsyncpa [#allocation3], 0
    %8 = vsyncpa [#allocation4], 0
    // Predicated region
    $region2: #{tpu_custom_call.1} parent=1 // pred_check
      _
    $region3: #{tpu_custom_call.1} parent=1 // pred_check_branch
      %10 = sbr.rel (0) target = $region5
    $region4: #{tpu_custom_call.1} parent=1 // pred_region
      %s12 = ssub.s32 256, 256
      %13 = vsyncadd [#allocation3], %s12
      %s14 = sshll.u32 [#allocation2], 4
      %s15 = int_to_ptr.vmem [resolvable:$true] %s14
      %20 = dma.hbm_to_vmem [thread:$0]  %s0, 256, %s15, [#allocation3], 128, 128, 8
    $region5: #{tpu_custom_call.1} parent=1 // pred_fallthru
      _
    // Predicated region
    $region6: #{tpu_custom_call.1} parent=1 // pred_check
      _
    $region7: #{tpu_custom_call.1} parent=1 // pred_check_branch
      %22 = sbr.rel (0) target = $region9
    $region8: #{tpu_custom_call.1} parent=1 // pred_region
      _
    $region9: #{tpu_custom_call.1} parent=1 // pred_fallthru
      _
    // Predicated region
    $region10: #{tpu_custom_call.1} parent=1 // pred_check
      _
    $region11: #{tpu_custom_call.1} parent=1 // pred_check_branch
      %24 = sbr.rel (0) target = $region13
    $region12: #{tpu_custom_call.1} parent=1 // pred_region
      %25 = dma.done [#allocation3], 256
    $region13: #{tpu_custom_call.1} parent=1 // pred_fallthru
      _
    %v26 = vld [vmem:[#allocation2] sm:$0xff]
    %v27 = vld [vmem:[#allocation2 + $0x8] sm:$0xff]
    %v28 = vmul.f32 %v26, %v26
    %v29 = vmul.f32 %v27, %v27
    %v32 = vcombine.high %v28, %v28
    %v33 = vcombine.high %v29, %v29
    %vm36 = vcmask 1043456
    %v37 = vsel %vm36, %v28, 0.0
    %v38 = vrot.slane %v37, 4
    %v39 = vadd.f32 %v37, %v38
    %v40 = vrot.slane %v39, 2
    %v41 = vadd.f32 %v39, %v40
    %v42 = vrot.slane %v41, 1
    %v43 = vadd.f32 %v41, %v42
    %v44 = vsel %vm36, %v32, 0.0
    %v45 = vrot.slane %v44, 4
    %v46 = vadd.f32 %v44, %v45
    %v47 = vrot.slane %v46, 2
    %v48 = vadd.f32 %v46, %v47
    %v49 = vrot.slane %v48, 1
    %v50 = vadd.f32 %v48, %v49
    %v51 = vsel %vm36, %v29, 0.0
    %v52 = vrot.slane %v51, 4
    %v53 = vadd.f32 %v51, %v52
    %v54 = vrot.slane %v53, 2
    %v55 = vadd.f32 %v53, %v54
    %v56 = vrot.slane %v55, 1
    %v57 = vadd.f32 %v55, %v56
    %v58 = vsel %vm36, %v33, 0.0
    %v59 = vrot.slane %v58, 4
    %v60 = vadd.f32 %v58, %v59
    %v61 = vrot.slane %v60, 2
    %v62 = vadd.f32 %v60, %v61
    %v63 = vrot.slane %v62, 1
    %v64 = vadd.f32 %v62, %v63
    %v65 = vmax.f32 %v43, 1e-24
    %v66 = vmax.f32 %v50, 1e-24
    %v67 = vmax.f32 %v57, 1e-24
    %v68 = vmax.f32 %v64, 1e-24
    %v69 = vrsqrt.pop %v65
    %v70 = vrsqrt.pop %v66
    %v71 = vrsqrt.pop %v67
    %v72 = vrsqrt.pop %v68
    %v77 = vcombine.low %v69, %v70
    %v78 = vcombine.low %v71, %v72
    %v81 = vmul.f32 %v26, %v77
    %v82 = vmul.f32 %v27, %v78
    %v83 = vld [vmem:[%s1] sm:$0xf]
    %85 = vset.pattern.permute.xlu0 0
    %86 = vperm.xlu0 %85, %v83
    %v87 = vpop.permute.xlu0 %86
    %v89 = vunpack.c.l.s4 839922192
    %v90 = vunpack.c.0.s8 %v89
    %v91 = vlaneseq
    %v92 = vshrl.u32 %v91, 7
    %v93 = vsub.s32 %v90, %v92
    %v94 = vrot.slane %v87, %v93
    %v96 = vmul.f32 %v81, %v94
    %v97 = vmul.f32 %v82, %v94
    %98 = vst [vmem:[#allocation5] sm:$0xff] %v96
    %99 = vst [vmem:[#allocation5 + $0x8] sm:$0xff] %v97
    // Predicated region
    $region14: #{tpu_custom_call.1} parent=1 // pred_check
      _
    $region15: #{tpu_custom_call.1} parent=1 // pred_check_branch
      %101 = sbr.rel (0) target = $region17
    $region16: #{tpu_custom_call.1} parent=1 // pred_region
      %s103 = ssub.s32 256, 256
      %104 = vsyncadd [#allocation4], %s103
      %s105 = sshll.u32 [#allocation5], 4
      %s106 = int_to_ptr.vmem [resolvable:$true] %s105
      %111 = dma.vmem_to_hbm [thread:$0]  %s106, 256, %s2, [#allocation4], 128, 128, 8
    $region17: #{tpu_custom_call.1} parent=1 // pred_fallthru
      _
    // Predicated region
    $region18: #{tpu_custom_call.1} parent=1 // pred_check
      _
    $region19: #{tpu_custom_call.1} parent=1 // pred_check_branch
      %113 = sbr.rel (0) target = $region21
    $region20: #{tpu_custom_call.1} parent=1 // pred_region
      %114 = dma.done [#allocation4], 256
    $region21: #{tpu_custom_call.1} parent=1 // pred_fallthru
      _
    %115 = vsyncpa [#allocation3], 1
    %116 = vsyncpa [#allocation4], 1

</llo_original>
